<compile_context>
chip_gen: v6e
topology: v6e:2x2x1
jax: 0.10.0
libtpu: 0.0.40
codegen_flags: <defaults>
</compile_context>

<pallas_src>
import jax
import jax.numpy as jnp
import numpy as np
from jax import lax
from jax.experimental import pallas as pl
from jax.experimental.pallas import tpu as pltpu

EPS = 1e-5
_VMEM_LIMIT = 40 * 1024 * 1024


# ---------------- tiling helpers ---------------------------------------------------------------
def _round_up(x, m):
    return ((x + m - 1) // m) * m


def _pick_spatial_tile(s, bytes_per_lane, budget_bytes=12 << 20):
    """Largest multiple-of-128 divisor of s whose per-step slabs fit the budget."""
    if s % 128 != 0:
        # block == full array dim is exempt from the 128-lane rule.
        # TODO(synk): cdiv grid + masked tail for huge volumes with no 128-aligned divisor.
        return s
    cap = max(budget_bytes // max(bytes_per_lane, 1), 128)
    start = (min(cap, s) // 128) * 128
    for t in range(start, 0, -128):
        if s % t == 0:
            return t
    return 128                      # 128 always divides s here (minimal-overshoot fallback)


def _pick_d_tile(d, hw, c2, itemsize, budget_bytes=14 << 20):
    """Depth tile for the 3x3x3 conv: largest divisor of d fitting the VMEM budget with
    lane-aligned (td*hw % 128 == 0) output blocks (or the whole depth, which is exempt)."""
    bpe = c2 * (2 * itemsize        # centre block, double buffered
                + 2 * 4             # out block (f32), double buffered
                + 3 * itemsize      # haloed z buffer + masked window temp
                + 4)                # f32 accumulator
    cap = max(budget_bytes // max(bpe * hw, 1), 1)
    for td in range(min(cap, d), 0, -1):
        if d % td == 0 and (td == d or (td * hw) % 128 == 0):
            return td
    for td in range(1, d + 1):      # nothing fits the budget: minimal aligned overshoot
        if d % td == 0 and (td * hw) % 128 == 0:
            return td
    return d


# ---------------- kernel 1: per-batch/per-channel sum & sum-of-squares (BN1 stats) -------------
def _stats_kernel(x_ref, s_ref, q_ref):
    @pl.when(pl.program_id(1) == 0)
    def _():
        s_ref[...] = jnp.zeros_like(s_ref)
        q_ref[...] = jnp.zeros_like(q_ref)

    xb = x_ref[...].astype(jnp.float32)            # (C, t): spatial on lanes (dense)
    s_ref[...] += jnp.sum(xb, axis=1, keepdims=True)
    q_ref[...] += jnp.sum(xb * xb, axis=1, keepdims=True)


def _channel_stats(x_ncs, t):
    n, c, s = x_ncs.shape
    return pl.pallas_call(
        _stats_kernel,
        out_shape=(jax.ShapeDtypeStruct((n, c, 1), jnp.float32),
                   jax.ShapeDtypeStruct((n, c, 1), jnp.float32)),
        grid_spec=pltpu.PrefetchScalarGridSpec(
            num_scalar_prefetch=0,
            grid=(n, s // t),
            in_specs=[pl.BlockSpec((None, c, t), lambda b, j: (b, 0, j))],
            out_specs=[pl.BlockSpec((None, c, 1), lambda b, j: (b, 0, 0)),
                       pl.BlockSpec((None, c, 1), lambda b, j: (b, 0, 0))]),
        # per-batch partials: batch axis is parallel (megacore on v7x), reduction axis arbitrary
        compiler_params=pltpu.CompilerParams(
            dimension_semantics=("parallel", "arbitrary"),
            vmem_limit_bytes=_VMEM_LIMIT),
    )(x_ncs)


# -------- kernel 2: 1x1x1 conv (BN1 pre-folded) + ReLU, fused with per-batch BN2 statistics ----
def _conv1x1_relu_stats_kernel(x_ref, w_ref, b_ref, y_ref, s_ref, q_ref):
    @pl.when(pl.program_id(1) == 0)
    def _():
        s_ref[...] = jnp.zeros_like(s_ref)
        q_ref[...] = jnp.zeros_like(q_ref)

    # y = W1' @ x + b1'  with  W1' = W1*diag(scale1), b1' = W1 @ shift1 (BN1 folded, exact)
    y = jnp.dot(w_ref[...], x_ref[...].astype(jnp.float32),
                preferred_element_type=jnp.float32) + b_ref[...]
    y = jnp.maximum(y, 0.0)
    y_ref[...] = y.astype(y_ref.dtype)             # bf16 (or f32) store of y1
    # BN2 batch statistics accumulated in f32 in the same pass (no second read of y1).
    s_ref[...] += jnp.sum(y, axis=1, keepdims=True)
    q_ref[...] += jnp.sum(y * y, axis=1, keepdims=True)


def _conv1x1_relu_stats(x_ncs, w1f, b1f, t, out_dtype):
    n, c1, s = x_ncs.shape
    c2 = w1f.shape[0]
    return pl.pallas_call(
        _conv1x1_relu_stats_kernel,
        out_shape=(jax.ShapeDtypeStruct((n, c2, s), out_dtype),
                   jax.ShapeDtypeStruct((n, c2, 1), jnp.float32),
                   jax.ShapeDtypeStruct((n, c2, 1), jnp.float32)),
        grid_spec=pltpu.PrefetchScalarGridSpec(
            num_scalar_prefetch=0,
            grid=(n, s // t),
            in_specs=[pl.BlockSpec((None, c1, t), lambda b, j: (b, 0, j)),
                      pl.BlockSpec((c2, c1), lambda b, j: (0, 0)),
                      pl.BlockSpec((c2, 1), lambda b, j: (0, 0))],
            out_specs=[pl.BlockSpec((None, c2, t), lambda b, j: (b, 0, j)),
                       pl.BlockSpec((None, c2, 1), lambda b, j: (b, 0, 0)),
                       pl.BlockSpec((None, c2, 1), lambda b, j: (b, 0, 0))]),
        compiler_params=pltpu.CompilerParams(
            dimension_semantics=("parallel", "arbitrary"),
            vmem_limit_bytes=_VMEM_LIMIT),
    )(x_ncs, w1f, b1f)


# -------- kernel 3: BN2 affine + 3x3x3 conv (pad=1) + ReLU, depth-tiled with plane halo --------
def _bn2_conv3x3x3_relu(y1, scale2, shift2, w_taps, d, h, w, td):
    n, c2, s = y1.shape
    hw = h * w
    nd = d // td
    T = td * hw                       # output lanes per grid step
    WL = (td + 2) * hw                # haloed window length (centre + one plane each side)
    CB = _round_up(hw + w + 1, 128)   # centre start inside the z buffer (lane aligned)
    G = CB - hw                       # guard width (>= w+1) on each end
    RH = CB + T                       # right halo plane start
    L = RH + hw + G                   # total z-buffer length
    zdt = y1.dtype                    # compute dtype of z / weights (bf16 or f32)

    def kernel(yc_ref, yh_ref, sc_ref, sh_ref, w_ref, o_ref, xb_ref, hst_ref, sem_ref):
        b = pl.program_id(0)
        di = pl.program_id(1)
        not_first = di > 0
        not_last = di < nd - 1

        # Kick off the two single-plane depth-halo DMAs (raw y1) as early as possible.
        @pl.when(not_first)
        def _():
            pltpu.make_async_copy(yh_ref.at[b, :, pl.ds(di * T - hw, hw)],
                                  hst_ref.at[0], sem_ref.at[0]).start()

        @pl.when(not_last)
        def _():
            pltpu.make_async_copy(yh_ref.at[b, :, pl.ds((di + 1) * T, hw)],
                                  hst_ref.at[1], sem_ref.at[1]).start()

        scale = sc_ref[...]           # (c2, 1) f32
        shift = sh_ref[...]

        def affine(v):                # BN2 affine in f32, stored in the compute dtype
            return (v.astype(jnp.float32) * scale + shift).astype(zdt)

        # Centre planes (auto-pipelined block) while the halo DMAs are in flight.
        xb_ref[:, CB:CB + T] = affine(yc_ref[...])

        # Depth-halo planes: zero at the volume boundary (= conv zero padding), otherwise
        # the DMA'd neighbouring plane with the affine applied.
        @pl.when(di == 0)
        def _():
            xb_ref[:, G:CB] = jnp.zeros((c2, hw), zdt)

        @pl.when(not_first)
        def _():
            pltpu.make_async_copy(yh_ref.at[b, :, pl.ds(di * T - hw, hw)],
                                  hst_ref.at[0], sem_ref.at[0]).wait()
            xb_ref[:, G:CB] = affine(hst_ref[0])

        @pl.when(di == nd - 1)
        def _():
            xb_ref[:, RH:RH + hw] = jnp.zeros((c2, hw), zdt)

        @pl.when(not_last)
        def _():
            pltpu.make_async_copy(yh_ref.at[b, :, pl.ds((di + 1) * T, hw)],
                                  hst_ref.at[1], sem_ref.at[1]).wait()
            xb_ref[:, RH:RH + hw] = affine(hst_ref[1])

        # In-plane (kh, kw) validity masks from iota (periodic over every h*w plane and
        # shared by the 3 kd taps).  The guard lanes [0, G) / [L-G, L) are only ever read
        # at masked positions and jnp.where is a select, so they need no zeroing.
        lane = lax.broadcasted_iota(jnp.int32, (1, WL), 1)
        col = lane % w
        row = (lane // w) % h
        row_ok = {-1: row >= 1, 0: None, 1: row < h - 1}
        col_ok = {-1: col >= 1, 0: None, 1: col < w - 1}

        zero = jnp.zeros((), zdt)
        acc = jnp.zeros((c2, T), jnp.float32)
        for kh in (-1, 0, 1):
            for kw in (-1, 0, 1):
                off = G + kh * w + kw                      # static, >= 0 (G >= w+1)
                win = xb_ref[:, off:off + WL]              # one unaligned window load
                mask = row_ok[kh]
                if col_ok[kw] is not None:
                    mask = col_ok[kw] if mask is None else mask & col_ok[kw]
                if mask is not None:
                    win = jnp.where(mask, win, zero)
                for kd in (-1, 0, 1):                      # +-hw shifts reuse the window
                    tap = (kd + 1) * 9 + (kh + 1) * 3 + (kw + 1)
                    acc = acc + jnp.dot(w_ref[tap],
                                        win[:, (kd + 1) * hw:(kd + 1) * hw + T],
                                        preferred_element_type=jnp.float32)
        o_ref[...] = jnp.maximum(acc, 0.0).astype(o_ref.dtype)

    return pl.pallas_call(
        kernel,
        out_shape=jax.ShapeDtypeStruct((n, c2, s), jnp.float32),
        grid_spec=pltpu.PrefetchScalarGridSpec(
            num_scalar_prefetch=0,
            grid=(n, nd),
            in_specs=[pl.BlockSpec((None, c2, T), lambda b, di: (b, 0, di)),
                      pl.BlockSpec(memory_space=pl.ANY),          # same y1, for halo DMAs
                      pl.BlockSpec((c2, 1), lambda b, di: (0, 0)),
                      pl.BlockSpec((c2, 1), lambda b, di: (0, 0)),
                      pl.BlockSpec((27, c2, c2), lambda b, di: (0, 0, 0))],
            out_specs=pl.BlockSpec((None, c2, T), lambda b, di: (b, 0, di)),
            scratch_shapes=[pltpu.VMEM((c2, L), zdt),             # haloed z buffer
                            pltpu.VMEM((2, c2, hw), zdt),         # halo plane staging
                            pltpu.SemaphoreType.DMA((2,))]),
        compiler_params=pltpu.CompilerParams(
            dimension_semantics=("parallel", "parallel"),
            vmem_limit_bytes=_VMEM_LIMIT),
    )(y1, y1, scale2, shift2, w_taps)


# ---------------- wrapper: full DoubleConv forward ---------------------------------------------
def double_conv_forward(x_ncdhw, params, *, compute_dtype=jnp.bfloat16,
                        spatial_tile=None, d_tile=None):
    n, c1, d, h, w = x_ncdhw.shape
    c2 = params["w1"].shape[0]
    hw = h * w
    s = d * hw
    m = n * s
    itemsize = jnp.dtype(compute_dtype).itemsize

    # Channels-first, flattened-spatial layout (N, C, S): free reshape, no transpose.
    x = x_ncdhw.reshape(n, c1, s).astype(jnp.float32)

    t1 = spatial_tile or _pick_spatial_tile(s, 8 * c1)
    t2 = spatial_tile or _pick_spatial_tile(s, 8 * c1 + (4 + 2 * itemsize) * c2)
    for t in (t1, t2):
        assert s % t == 0 and (t == s or t % 128 == 0), (s, t)

    # ---- pass 1: BN1 batch statistics (streaming reduction over x) ----
    s1p, q1p = _channel_stats(x, t1)
    s1, q1 = s1p.sum(axis=0), q1p.sum(axis=0)
    mean1 = s1 / m
    var1 = q1 / m - mean1 * mean1      # biased variance (training-mode BN)
    scale1 = params["gamma1"].reshape(-1, 1) / jnp.sqrt(var1 + EPS)
    shift1 = params["beta1"].reshape(-1, 1) - mean1 * scale1

    # Fold BN1 affine into the 1x1 conv (exact, since conv1 has no padding):
    w1 = params["w1"].reshape(c2, c1).astype(jnp.float32)
    w1f = w1 * scale1.reshape(1, c1)   # W1 * diag(scale1)
    b1f = w1 @ shift1                  # (C2, 1)

    # ---- pass 2: conv1x1 + ReLU fused with BN2 statistics (y1 stored in compute_dtype) ----
    y1, s2p, q2p = _conv1x1_relu_stats(x, w1f, b1f, t2, compute_dtype)
    s2, q2 = s2p.sum(axis=0), q2p.sum(axis=0)
    mean2 = s2 / m
    var2 = q2 / m - mean2 * mean2
    scale2 = params["gamma2"].reshape(-1, 1) / jnp.sqrt(var2 + EPS)
    shift2 = params["beta2"].reshape(-1, 1) - mean2 * scale2

    # ---- pass 3: BN2 affine + conv3x3x3 (pad=1) + ReLU, depth-tiled ----
    td = d_tile or _pick_d_tile(d, hw, c2, itemsize)
    assert d % td == 0 and (td == d or (td * hw) % 128 == 0), (d, td, hw)
    # weight taps ordered (kd, kh, kw): w_taps[t] = W2[:, :, kd, kh, kw]
    w_taps = jnp.transpose(params["w2"], (2, 3, 4, 0, 1)).reshape(27, c2, c2).astype(compute_dtype)
    out = _bn2_conv3x3x3_relu(y1, scale2.astype(jnp.float32), shift2.astype(jnp.float32),
                              w_taps, d, h, w, td)

    return out.reshape(n, c2, d, h, w)     # already NCDHW -- free reshape


# ---------------- pure-JAX reference (correctness check) ---------------------------------------
def double_conv_reference(x, params):
    def bn(v, gamma, beta):
        mean = v.mean(axis=(0, 2, 3, 4), keepdims=True)
        var = v.var(axis=(0, 2, 3, 4), keepdims=True)   # biased
        return ((v - mean) / jnp.sqrt(var + EPS)
                * gamma.reshape(1, -1, 1, 1, 1) + beta.reshape(1, -1, 1, 1, 1))

    dn = ("NCDHW", "OIDHW", "NCDHW")
    y = bn(x, params["gamma1"], params["beta1"])
    y = lax.conv_general_dilated(y, params["w1"], (1, 1, 1), [(0, 0)] * 3,
                                 dimension_numbers=dn)
    y = jnp.maximum(y, 0.0)
    y = bn(y, params["gamma2"], params["beta2"])
    y = lax.conv_general_dilated(y, params["w2"], (1, 1, 1), [(1, 1)] * 3,
                                 dimension_numbers=dn)
    return jnp.maximum(y, 0.0)


if __name__ == "__main__":
    N, C1, C2, D, H, W = 2, 4, 8, 8, 8, 8     # DoubleConv(4, 8) on a small 3-D volume

    key = jax.random.PRNGKey(0)
    k = jax.random.split(key, 7)
    params = {
        "gamma1": 1.0 + 0.1 * jax.random.normal(k[0], (C1,), jnp.float32),
        "beta1": 0.1 * jax.random.normal(k[1], (C1,), jnp.float32),
        "w1": jax.random.normal(k[2], (C2, C1, 1, 1, 1), jnp.float32) / np.sqrt(C1),
        "gamma2": 1.0 + 0.1 * jax.random.normal(k[3], (C2,), jnp.float32),
        "beta2": 0.1 * jax.random.normal(k[4], (C2,), jnp.float32),
        "w2": jax.random.normal(k[5], (C2, C2, 3, 3, 3), jnp.float32) / np.sqrt(C2 * 27),
    }
    x = jax.random.normal(k[6], (N, C1, D, H, W), jnp.float32)

    ref = jax.block_until_ready(double_conv_reference(x, params))

    # 1) exact f32 intermediate, forced fine tiling: exercises the spatial-tile stats
    #    accumulation and the depth tiling + manual halo DMAs of the 3x3x3 conv.
    out = jax.block_until_ready(double_conv_forward(
        x, params, compute_dtype=jnp.float32, spatial_tile=128, d_tile=2))
    assert out.shape == (N, C2, D, H, W), out.shape
    np.testing.assert_allclose(np.asarray(out), np.asarray(ref), rtol=2e-3, atol=2e-3)

    # 2) default production config: bf16 y1 / W2 (halves the HBM traffic of passes 2-3),
    #    auto-picked tiles.  bf16 storage bounds |err| at ~1e-2, hence the looser tolerance.
    out = jax.block_until_ready(double_conv_forward(x, params))
    np.testing.assert_allclose(np.asarray(out), np.asarray(ref), rtol=4e-2, atol=4e-2)

    # 3) bf16 with forced spatial/depth tiling (exercises the bf16 halo-staging path).
    out = jax.block_until_ready(double_conv_forward(
        x, params, spatial_tile=128, d_tile=2))
    np.testing.assert_allclose(np.asarray(out), np.asarray(ref), rtol=4e-2, atol=4e-2)

    print("KERNEL_OK")
</pallas_src>

<mosaic_0001>
module attributes {stable_mosaic.version = 11 : i64} {
  func.func @_stats_kernel(%arg0: i32, %arg1: i32, %arg2: memref<1x4x128xf32, #tpu.memory_space<vmem>>, %arg3: memref<1x4x1xf32, #tpu.memory_space<vmem>>, %arg4: memref<1x4x1xf32, #tpu.memory_space<vmem>>) attributes {dimension_semantics = [#tpu.dimension_semantics<parallel>, #tpu.dimension_semantics<arbitrary>], iteration_bounds = array<i64: 2, 4>, scalar_prefetch = 0 : i64, scratch_operands = 0 : i64, tpu.core_type = #tpu.core_type<tc>, window_params = [{transform_indices = @transform_0, window_bounds = array<i64: 1, 4, 128>}, {transform_indices = @transform_1, window_bounds = array<i64: 1, 4, 1>}, {transform_indices = @transform_2, window_bounds = array<i64: 1, 4, 1>}]} {
    %c0_i32 = arith.constant 0 : i32
    %0 = arith.cmpi eq, %arg1, %c0_i32 : i32
    %1 = arith.extui %0 : i1 to i32
    %c0_i32_0 = arith.constant 0 : i32
    %2 = arith.cmpi ne, %1, %c0_i32_0 : i32
    scf.if %2 {
      %cst_16 = arith.constant 0.000000e+00 : f32
      %22 = vector.broadcast %cst_16 : f32 to vector<4x1xf32>
      %c0_17 = arith.constant 0 : index
      %c0_18 = arith.constant 0 : index
      %c0_19 = arith.constant 0 : index
      %23 = vector.load %arg3[%c0_17, %c0_18, %c0_19] : memref<1x4x1xf32, #tpu.memory_space<vmem>>, vector<1x4x1xf32>
      %24 = vector.shape_cast %23 : vector<1x4x1xf32> to vector<4x1xf32>
      %25 = vector.shape_cast %22 : vector<4x1xf32> to vector<1x4x1xf32>
      tpu.vector_store %arg3[%c0_17, %c0_18, %c0_19], %25 {strides = array<i32>} : memref<1x4x1xf32, #tpu.memory_space<vmem>>, vector<1x4x1xf32>,
      %cst_20 = arith.constant 0.000000e+00 : f32
      %26 = vector.broadcast %cst_20 : f32 to vector<4x1xf32>
      %c0_21 = arith.constant 0 : index
      %c0_22 = arith.constant 0 : index
      %c0_23 = arith.constant 0 : index
      %27 = vector.load %arg4[%c0_21, %c0_22, %c0_23] : memref<1x4x1xf32, #tpu.memory_space<vmem>>, vector<1x4x1xf32>
      %28 = vector.shape_cast %27 : vector<1x4x1xf32> to vector<4x1xf32>
      %29 = vector.shape_cast %26 : vector<4x1xf32> to vector<1x4x1xf32>
      tpu.vector_store %arg4[%c0_21, %c0_22, %c0_23], %29 {strides = array<i32>} : memref<1x4x1xf32, #tpu.memory_space<vmem>>, vector<1x4x1xf32>,
    } else {
    }
    %c0 = arith.constant 0 : index
    %c0_1 = arith.constant 0 : index
    %c0_2 = arith.constant 0 : index
    %3 = vector.load %arg2[%c0, %c0_1, %c0_2] : memref<1x4x128xf32, #tpu.memory_space<vmem>>, vector<1x4x128xf32>
    %4 = vector.shape_cast %3 : vector<1x4x128xf32> to vector<4x128xf32>
    %c0_3 = arith.constant 0 : index
    %c0_4 = arith.constant 0 : index
    %c0_5 = arith.constant 0 : index
    %5 = vector.load %arg3[%c0_3, %c0_4, %c0_5] : memref<1x4x1xf32, #tpu.memory_space<vmem>>, vector<1x4x1xf32>
    %6 = vector.shape_cast %5 : vector<1x4x1xf32> to vector<4x1xf32>
    %cst = arith.constant dense<0.000000e+00> : vector<4xf32>
    %7 = vector.multi_reduction <add>, %4, %cst [1] : vector<4x128xf32> to vector<4xf32>
    %8 = vector.shape_cast %7 : vector<4xf32> to vector<4x1xf32>
    %9 = arith.addf %6, %8 : vector<4x1xf32>
    %c0_6 = arith.constant 0 : index
    %c0_7 = arith.constant 0 : index
    %c0_8 = arith.constant 0 : index
    %10 = vector.load %arg3[%c0_6, %c0_7, %c0_8] : memref<1x4x1xf32, #tpu.memory_space<vmem>>, vector<1x4x1xf32>
    %11 = vector.shape_cast %10 : vector<1x4x1xf32> to vector<4x1xf32>
    %12 = vector.shape_cast %9 : vector<4x1xf32> to vector<1x4x1xf32>
    tpu.vector_store %arg3[%c0_6, %c0_7, %c0_8], %12 {strides = array<i32>} : memref<1x4x1xf32, #tpu.memory_space<vmem>>, vector<1x4x1xf32>,
    %c0_9 = arith.constant 0 : index
    %c0_10 = arith.constant 0 : index
    %c0_11 = arith.constant 0 : index
    %13 = vector.load %arg4[%c0_9, %c0_10, %c0_11] : memref<1x4x1xf32, #tpu.memory_space<vmem>>, vector<1x4x1xf32>
    %14 = vector.shape_cast %13 : vector<1x4x1xf32> to vector<4x1xf32>
    %15 = arith.mulf %4, %4 : vector<4x128xf32>
    %cst_12 = arith.constant dense<0.000000e+00> : vector<4xf32>
    %16 = vector.multi_reduction <add>, %15, %cst_12 [1] : vector<4x128xf32> to vector<4xf32>
    %17 = vector.shape_cast %16 : vector<4xf32> to vector<4x1xf32>
    %18 = arith.addf %14, %17 : vector<4x1xf32>
    %c0_13 = arith.constant 0 : index
    %c0_14 = arith.constant 0 : index
    %c0_15 = arith.constant 0 : index
    %19 = vector.load %arg4[%c0_13, %c0_14, %c0_15] : memref<1x4x1xf32, #tpu.memory_space<vmem>>, vector<1x4x1xf32>
    %20 = vector.shape_cast %19 : vector<1x4x1xf32> to vector<4x1xf32>
    %21 = vector.shape_cast %18 : vector<4x1xf32> to vector<1x4x1xf32>
    tpu.vector_store %arg4[%c0_13, %c0_14, %c0_15], %21 {strides = array<i32>} : memref<1x4x1xf32, #tpu.memory_space<vmem>>, vector<1x4x1xf32>,
    return
  }
  func.func @transform_0(%arg0: i32, %arg1: i32) -> (i32, i32, i32) {
    %c0_i32 = arith.constant 0 : i32
    %c0_i32_0 = arith.constant 0 : i32
    return %arg0, %c0_i32, %arg1 : i32, i32, i32
  }
  func.func @transform_1(%arg0: i32, %arg1: i32) -> (i32, i32, i32) {
    %c0_i32 = arith.constant 0 : i32
    %c0_i32_0 = arith.constant 0 : i32
    %c0_i32_1 = arith.constant 0 : i32
    return %arg0, %c0_i32, %c0_i32_0 : i32, i32, i32
  }
  func.func @transform_2(%arg0: i32, %arg1: i32) -> (i32, i32, i32) {
    %c0_i32 = arith.constant 0 : i32
    %c0_i32_0 = arith.constant 0 : i32
    %c0_i32_1 = arith.constant 0 : i32
    return %arg0, %c0_i32, %c0_i32_0 : i32, i32, i32
  }
}

</mosaic_0001>

<llo_original>
// kernel: tpu_custom_call.1
$region0: #{tpu_custom_call.1}
  #allocation0 [shape = 'u32[]', space=smem, size = 0x4, offset = 0x4, fixed_abs, tag = 'smem constant byte address 0x4 - core index']
  #allocation1 [shape = 'u32[144,128]{1,0:T(1,128)}', space=vmem, size = 0x12000, scoped, tag = 'internal scratch']
  %s0 = inlined_call_operand.hbm [shape: f32[2,4,512], index: 0, kind: input, shape index: {}]
  %s1 = inlined_call_operand.vmem [shape: f32[2,4,1], index: 1, kind: output, shape index: {0}]
  %s2 = inlined_call_operand.vmem [shape: f32[2,4,1], index: 2, kind: output, shape index: {1}]
  %3 = xla_tuple %s1, %s2
  %s4 = sld [smem:[#allocation0]]
  $region53: #{tpu_custom_call.1} parent=0
    _
  %s6 = ssub.s32 1, %s4
  %s7 = scalar_select 0, %s6, %s4
  $region1: #{tpu_custom_call.1} parent=0
    #allocation2 [shape = 'u8[4096]{0}', space=vmem, size = 0x1000, scoped, tag = 'input window, operand 0']
    #allocation3 [shape = 's32[2]{0}', space=sflag, size = 0x8, scoped, tag = 'scoped memory for tpu_custom_call.1']
    %8 = vsyncpa [#allocation3], 0
    %s9 = scalar_lea.sflag [#allocation3], 1
    %10 = vsyncpa %s9, 0
    loop: start=0, step=1, limit=10
    $region2: #{tpu_custom_call.1} parent=1 // loop_pre_header
      _
    $region3: #{tpu_custom_call.1} parent=1 // loop_header
      %s12 = sphi 0, %s16
      %p13 = scmp.ge.s32.totalorder %s12, 10
      %s19 = sphi 0, %s31
      %s20 = sphi 0, %s27
      %s21 = sphi 0, %s19
      %s22 = sphi 0, %s20
      %s23 = sphi 0, %s21
      %s24 = sphi 0, %s22
      %s36 = sphi 0, %s38
      %s39 = sphi 0, %s36
      %s40 = sphi 0, %s39
      %s56 = sphi 0, %s40
      %s62 = sphi 0, %s64
      %s65 = sphi 0, %s62
      %s66 = sphi 0, %s65
      %s82 = sphi 0, %s66
      %s88 = sphi 0, %s90
      %s91 = sphi 0, %s88
      %s92 = sphi 0, %s91
      %s108 = sphi 0, %s92
    $region4: #{tpu_custom_call.1} parent=1 // loop_header_branch
      %15 = sbr.rel (%p13) target = $region8
    $region5: #{tpu_custom_call.1} parent=1 // loop_body
      %s17 = ssub.s32 %s12, 1
      %s18 = ssub.s32 %s12, 2
      %s25 = sadd.s32 1, %s20
      %p26 = scmp.ge.s32.totalorder %s25, 4
      %s27 = scalar_select %p26, 0, %s25
      %s28 = sadd.s32 1, %s19
      %s29 = scalar_select %p26, %s28, %s19
      %p30 = scmp.ge.s32.totalorder %s29, 2
      %s31 = scalar_select %p30, 0, %s29
      %s32 = ssub.s32 %s19, %s31
      %s33 = ssub.s32 %s20, %s27
      %s34 = sor.u32 %s32, %s33
      %p35 = scmp.eq.s32.totalorder %s34, 0
      %s37 = sadd.s32 %s36, 1
      %s38 = scalar_select %p35, %s36, %s37
      %p41 = pneg %p35
      %p42 = scmp.eq.s32.totalorder %s12, 7
      %p43 = por %p41, %p42
      %p44 = scmp.ne.s32.totalorder %s36, %s39
      %p45 = scmp.eq.s32.totalorder %s12, 0
      %p46 = por %p44, %p45
      %p47 = scmp.ne.s32.totalorder %s36, %s39
      %p48 = scmp.eq.s32.totalorder %s17, 7
      %p49 = por %p47, %p48
      %p50 = scmp.ne.s32.totalorder %s39, %s40
      %p51 = scmp.eq.s32.totalorder %s17, 0
      %p52 = por %p50, %p51
      %p53 = scmp.ne.s32.totalorder %s39, %s40
      %p54 = scmp.eq.s32.totalorder %s18, 7
      %p55 = por %p53, %p54
      %p57 = scmp.ne.s32.totalorder %s40, %s56
      %p58 = scmp.eq.s32.totalorder %s18, 0
      %p59 = por %p57, %p58
      %s60 = ssub.s32 %s19, %s31
      %p61 = scmp.eq.s32.totalorder %s60, 0
      %s63 = sadd.s32 %s62, 1
      %s64 = scalar_select %p61, %s62, %s63
      %p67 = pneg %p61
      %p68 = scmp.eq.s32.totalorder %s12, 7
      %p69 = por %p67, %p68
      %p70 = scmp.ne.s32.totalorder %s62, %s65
      %p71 = scmp.eq.s32.totalorder %s12, 0
      %p72 = por %p70, %p71
      %p73 = scmp.ne.s32.totalorder %s62, %s65
      %p74 = scmp.eq.s32.totalorder %s17, 7
      %p75 = por %p73, %p74
      %p76 = scmp.ne.s32.totalorder %s65, %s66
      %p77 = scmp.eq.s32.totalorder %s17, 0
      %p78 = por %p76, %p77
      %p79 = scmp.ne.s32.totalorder %s65, %s66
      %p80 = scmp.eq.s32.totalorder %s18, 7
      %p81 = por %p79, %p80
      %p83 = scmp.ne.s32.totalorder %s66, %s82
      %p84 = scmp.eq.s32.totalorder %s18, 0
      %p85 = por %p83, %p84
      %s86 = ssub.s32 %s19, %s31
      %p87 = scmp.eq.s32.totalorder %s86, 0
      %s89 = sadd.s32 %s88, 1
      %s90 = scalar_select %p87, %s88, %s89
      %p93 = pneg %p87
      %p94 = scmp.eq.s32.totalorder %s12, 7
      %p95 = por %p93, %p94
      %p96 = scmp.ne.s32.totalorder %s88, %s91
      %p97 = scmp.eq.s32.totalorder %s12, 0
      %p98 = por %p96, %p97
      %p99 = scmp.ne.s32.totalorder %s88, %s91
      %p100 = scmp.eq.s32.totalorder %s17, 7
      %p101 = por %p99, %p100
      %p102 = scmp.ne.s32.totalorder %s91, %s92
      %p103 = scmp.eq.s32.totalorder %s17, 0
      %p104 = por %p102, %p103
      %p105 = scmp.ne.s32.totalorder %s91, %s92
      %p106 = scmp.eq.s32.totalorder %s18, 7
      %p107 = por %p105, %p106
      %p109 = scmp.ne.s32.totalorder %s92, %s108
      %p110 = scmp.eq.s32.totalorder %s18, 0
      %p111 = por %p109, %p110
      %p112 = scmp.le.s32.totalorder 1, %s12
      %p113 = scmp.lt.s32.totalorder %s12, 9
      %p114 = pnand %p112, %p113
      %p115 = pneg %p114
      // Predicated region
      $region9: #{tpu_custom_call.1} parent=5 // pred_check
        _
      $region10: #{tpu_custom_call.1} parent=5 // pred_check_branch
        %117 = sbr.rel (%p114) target = $region12
      $region11: #{tpu_custom_call.1} parent=5 // pred_region
        %s118 = ssub.s32 %s12, 1
      $region12: #{tpu_custom_call.1} parent=5 // pred_fallthru
        _
      %p119 = scmp.lt.s32.totalorder %s12, 8
      // Predicated region
      $region13: #{tpu_custom_call.1} parent=5 // pred_check
        %p120 = pneg %p119
      $region14: #{tpu_custom_call.1} parent=5 // pred_check_branch
        %122 = sbr.rel (%p120) target = $region16
      $region15: #{tpu_custom_call.1} parent=5 // pred_region
        // Predicated region
        $region17: #{tpu_custom_call.1} parent=15 // pred_check
          %p123 = pneg %p46
        $region18: #{tpu_custom_call.1} parent=15 // pred_check_branch
          %125 = sbr.rel (%p123) target = $region20
        $region19: #{tpu_custom_call.1} parent=15 // pred_region
          %s126 = sand.u32 %s36, 1
          %s127 = scalar_lea.sflag [#allocation3], %s126
          %s128 = sand.u32 %s36, 1
          %s129 = smul.addr %s128, 4
          %s130 = scalar_lea.vmem [#allocation2], %s129
          %s132 = ssub.s32 64, 64
          %133 = vsyncadd %s127, %s132
          %s134 = smul.addr %s19, 4
          %s135 = sadd.s32 %s20, %s134
          %s136 = smul.addr %s135, 64
          %s137 = scalar_lea.hbm %s0, %s136
          %s139 = sshll.u32 %s130, 4
          %s140 = int_to_ptr.vmem [resolvable:$true] %s139
          %142 = dma.hbm_to_vmem [thread:$0]  %s137, 64, %s140, %s127
        $region20: #{tpu_custom_call.1} parent=15 // pred_fallthru
          _
      $region16: #{tpu_custom_call.1} parent=5 // pred_fallthru
        _
      %p143 = scmp.le.s32.totalorder 1, %s12
      %p144 = scmp.lt.s32.totalorder %s12, 9
      %p145 = pnand %p143, %p144
      %p146 = pneg %p145
      // Predicated region
      $region21: #{tpu_custom_call.1} parent=5 // pred_check
        _
      $region22: #{tpu_custom_call.1} parent=5 // pred_check_branch
        %148 = sbr.rel (%p145) target = $region24
      $region23: #{tpu_custom_call.1} parent=5 // pred_region
        %s149 = ssub.s32 %s12, 1
        %s150 = sand.u32 %s39, 1
        %s151 = scalar_lea.sflag [#allocation3], %s150
        %s152 = sand.u32 %s39, 1
        %s153 = smul.addr %s152, 4
        %s154 = scalar_lea.vmem [#allocation2], %s153
        // Predicated region
        $region25: #{tpu_custom_call.1} parent=23 // pred_check
          %p155 = pneg %p52
        $region26: #{tpu_custom_call.1} parent=23 // pred_check_branch
          %157 = sbr.rel (%p155) target = $region28
        $region27: #{tpu_custom_call.1} parent=23 // pred_region
          %158 = dma.done %s151, 64
        $region28: #{tpu_custom_call.1} parent=23 // pred_fallthru
          _
        %s159 = sand.u32 %s39, 1
        %s160 = scalar_lea.sflag [#allocation3], %s159
        %s161 = sand.u32 %s39, 1
        %s162 = smul.addr %s161, 4
        %s163 = scalar_lea.vmem [#allocation2], %s162
        %p164 = pneg %p52
        %p165 = pneg %p49
        %p166 = pneg %p78
        %p167 = pneg %p75
        %p168 = scmp.lt.s32.totalorder %s21, 1
        %s169 = scalar_select %p168, %s21, 1
        %s170 = smul.addr %s169, 4
        %s171 = scalar_lea.vmem %s1, %s170
        %p172 = pneg %p104
        %p173 = pneg %p101
        %p174 = scmp.lt.s32.totalorder %s21, 1
        %s175 = scalar_select %p174, %s21, 1
        %s176 = smul.addr %s175, 4
        %s177 = scalar_lea.vmem %s2, %s176
        %p178 = scmp.lt.s32.totalorder %s21, 1
        %s179 = scalar_select %p178, %s21, 1
        %s180 = smul.addr %s179, 4
        %s181 = scalar_lea.vmem %s1, %s180
        %p182 = scmp.lt.s32.totalorder %s21, 1
        %s183 = scalar_select %p182, %s21, 1
        %s184 = smul.addr %s183, 4
        %s185 = scalar_lea.vmem %s2, %s184
        %p186 = scmp.eq.s32.totalorder %s22, 0
        // Predicated region
        $region29: #{tpu_custom_call.1} parent=23 // pred_check
          %p187 = pneg %p186
        $region30: #{tpu_custom_call.1} parent=23 // pred_check_branch
          %189 = sbr.rel (%p187) target = $region32
        $region31: #{tpu_custom_call.1} parent=23 // pred_region
          %vm190 = vcmask 3072
          %191 = vst.msk [vmem:[%s181] sm:$0xf] %vm190, 0.0
          %192 = vst.msk [vmem:[%s185] sm:$0xf] %vm190, 0.0
        $region32: #{tpu_custom_call.1} parent=23 // pred_fallthru
          _
        %v193 = vld [vmem:[%s154] sm:$0xf]
        %v194 = vld [vmem:[%s181] sm:$0xf]
        %vm195 = vcmask 1043456
        %v196 = vsel %vm195, %v193, 0.0
        %197 = vadd.xlane.f32.xlu0 %v196
        %v198 = vpop.xlane.xlu0 %197
        %v199 = vadd.f32 %v194, %v198
        %vm200 = vcmask 3072
        %201 = vst.msk [vmem:[%s181] sm:$0xf] %vm200, %v199
        %v202 = vld [vmem:[%s185] sm:$0xf]
        %v203 = vmul.f32 %v193, %v193
        %v204 = vsel %vm195, %v203, 0.0
        %205 = vadd.xlane.f32.xlu0 %v204
        %v206 = vpop.xlane.xlu0 %205
        %v207 = vadd.f32 %v202, %v206
        %208 = vst.msk [vmem:[%s185] sm:$0xf] %vm200, %v207
        %p209 = scmp.lt.s32.totalorder %s21, 1
        %s210 = scalar_select %p209, %s21, 1
        %s211 = smul.addr %s210, 4
        %s212 = scalar_lea.vmem %s1, %s211
        %p213 = scmp.lt.s32.totalorder %s21, 1
        %s214 = scalar_select %p213, %s21, 1
        %s215 = smul.addr %s214, 4
        %s216 = scalar_lea.vmem %s2, %s215
        // Predicated region
        $region33: #{tpu_custom_call.1} parent=23 // pred_check
          %p217 = pneg %p75
        $region34: #{tpu_custom_call.1} parent=23 // pred_check_branch
          %219 = sbr.rel (%p217) target = $region36
        $region35: #{tpu_custom_call.1} parent=23 // pred_region
          _
        $region36: #{tpu_custom_call.1} parent=23 // pred_fallthru
          _
        // Predicated region
        $region37: #{tpu_custom_call.1} parent=23 // pred_check
          %p220 = pneg %p101
        $region38: #{tpu_custom_call.1} parent=23 // pred_check_branch
          %222 = sbr.rel (%p220) target = $region40
        $region39: #{tpu_custom_call.1} parent=23 // pred_region
          _
        $region40: #{tpu_custom_call.1} parent=23 // pred_fallthru
          _
      $region24: #{tpu_custom_call.1} parent=5 // pred_fallthru
        _
      %p223 = scmp.le.s32.totalorder 2, %s12
      // Predicated region
      $region41: #{tpu_custom_call.1} parent=5 // pred_check
        %p224 = pneg %p223
      $region42: #{tpu_custom_call.1} parent=5 // pred_check_branch
        %226 = sbr.rel (%p224) target = $region44
      $region43: #{tpu_custom_call.1} parent=5 // pred_region
        %s227 = ssub.s32 %s12, 2
        // Predicated region
        $region45: #{tpu_custom_call.1} parent=43 // pred_check
          %p228 = pneg %p81
        $region46: #{tpu_custom_call.1} parent=43 // pred_check_branch
          %230 = sbr.rel (%p228) target = $region48
        $region47: #{tpu_custom_call.1} parent=43 // pred_region
          %p231 = scmp.lt.s32.totalorder %s23, 1
          %s232 = scalar_select %p231, %s23, 1
          %s233 = smul.addr %s232, 4
          %s234 = scalar_lea.vmem %s1, %s233
        $region48: #{tpu_custom_call.1} parent=43 // pred_fallthru
          _
        // Predicated region
        $region49: #{tpu_custom_call.1} parent=43 // pred_check
          %p235 = pneg %p107
        $region50: #{tpu_custom_call.1} parent=43 // pred_check_branch
          %237 = sbr.rel (%p235) target = $region52
        $region51: #{tpu_custom_call.1} parent=43 // pred_region
          %p238 = scmp.lt.s32.totalorder %s23, 1
          %s239 = scalar_select %p238, %s23, 1
          %s240 = smul.addr %s239, 4
          %s241 = scalar_lea.vmem %s2, %s240
        $region52: #{tpu_custom_call.1} parent=43 // pred_fallthru
          _
      $region44: #{tpu_custom_call.1} parent=5 // pred_fallthru
        _
    $region6: #{tpu_custom_call.1} parent=1 // loop_footer
      %s16 = sadd.s32 1, %s12
    $region7: #{tpu_custom_call.1} parent=1 // loop_footer_branch
      %11 = sbr.rel target = $region3
    $region8: #{tpu_custom_call.1} parent=1 // loop_exit
      _
    %242 = vsyncpa [#allocation3], 1
    %s243 = scalar_lea.sflag [#allocation3], 1
    %244 = vsyncpa %s243, 1

</llo_original>
